<compile_context>
chip_gen: v6e
topology: v6e:2x2x1
jax: 0.10.0
libtpu: 0.0.40
codegen_flags: <defaults>
</compile_context>

<pallas_src>
import functools

import jax
import jax.numpy as jnp
from jax.experimental import pallas as pl
from jax.experimental.pallas import tpu as pltpu

F_DIM, W_DIM, H_DIM, O_DIM = 41, 41, 128, 2


def _mlp_kernel(f_ref, w_ref, w1f_ref, w1w_ref, b1_ref, w2_ref, b2_ref, y_ref):
    # Fused concat: two MXU matmuls on the separate halves, f32 accumulation.
    h = jnp.dot(f_ref[...], w1f_ref[...], preferred_element_type=jnp.float32)
    h = h + jnp.dot(w_ref[...], w1w_ref[...], preferred_element_type=jnp.float32)
    h = jnp.maximum(h + b1_ref[...], 0.0)  # f32 VPU math (v5e has no bf16 VPU/EUP)
    o = jnp.dot(h.astype(w2_ref.dtype), w2_ref[...],
                preferred_element_type=jnp.float32) + b2_ref[...]
    y_ref[...] = jax.nn.sigmoid(o)  # output is only 2 lanes wide; masked store is
    #                                 fine here (do NOT pad HBM output at scale).


@functools.partial(jax.jit, static_argnames=("block_b", "io_dtype"))
def c660_mf_forward(f, w, params, *, block_b=512, io_dtype=jnp.bfloat16):
    """f: [B, F_DIM], w: [B, W_DIM]. Returns (y[:, 0:1], y[:, 1:2])."""
    B = f.shape[0]

    # Storage/DMA dtype for the bandwidth-dominant streams; accumulation stays f32.
    f = f.astype(io_dtype)
    w = w.astype(io_dtype)
    w1 = params["w1"].astype(io_dtype)
    w1f, w1w = w1[:F_DIM], w1[F_DIM:]          # split once, outside the kernel
    w2 = params["w2"].astype(io_dtype)
    b1 = params["b1"].astype(jnp.float32)
    b2 = params["b2"].astype(jnp.float32)

    # Batch tile: full batch when small (block == full dim is always legal),
    # otherwise a large multiple of 8 that comfortably fits v7x's VMEM budget.
    tb = B if B <= block_b else block_b
    grid = (pl.cdiv(B, tb),)

    resident = lambda shape: pl.BlockSpec(shape, lambda i: (0, 0))  # weights stay in VMEM

    itemsize = jnp.dtype(io_dtype).itemsize
    flops = 2 * B * ((F_DIM + W_DIM) * H_DIM + H_DIM * O_DIM)
    bytes_accessed = (
        B * (F_DIM + W_DIM) * itemsize          # activations in
        + B * O_DIM * 4                         # sigmoid out (f32)
        + (F_DIM + W_DIM) * H_DIM * itemsize    # w1
        + H_DIM * O_DIM * itemsize              # w2
        + (H_DIM + O_DIM) * 4                   # biases
    )

    y = pl.pallas_call(
        _mlp_kernel,
        out_shape=jax.ShapeDtypeStruct((B, O_DIM), jnp.float32),
        grid=grid,
        in_specs=[
            pl.BlockSpec((tb, F_DIM), lambda i: (i, 0)),   # f tile (double-buffered)
            pl.BlockSpec((tb, W_DIM), lambda i: (i, 0)),   # w tile (double-buffered)
            resident((F_DIM, H_DIM)),                      # w1[:41]
            resident((W_DIM, H_DIM)),                      # w1[41:]
            resident((1, H_DIM)),                          # b1
            resident((H_DIM, O_DIM)),                      # w2
            resident((1, O_DIM)),                          # b2
        ],
        out_specs=pl.BlockSpec((tb, O_DIM), lambda i: (i, 0)),
        compiler_params=pltpu.CompilerParams(dimension_semantics=("parallel",)),
        cost_estimate=pl.CostEstimate(
            flops=flops, transcendentals=2 * B * O_DIM, bytes_accessed=bytes_accessed),
    )(f, w, w1f, w1w, b1, w2, b2)

    # Contiguous static slices — free views, no gather.
    return y[:, 0:1], y[:, 1:2]


def init_params(key, f_dim=F_DIM, w_dim=W_DIM, h_dim=H_DIM, o_dim=O_DIM):
    """Deterministic init matching torch.nn.Linear's U(-1/sqrt(fan_in), 1/sqrt(fan_in))."""
    in1 = f_dim + w_dim
    k1, k2, k3, k4 = jax.random.split(key, 4)
    bound1 = 1.0 / jnp.sqrt(in1)
    bound2 = 1.0 / jnp.sqrt(h_dim)
    return {
        "w1": jax.random.uniform(k1, (in1, h_dim), jnp.float32, -bound1, bound1),
        "b1": jax.random.uniform(k2, (1, h_dim), jnp.float32, -bound1, bound1),
        "w2": jax.random.uniform(k3, (h_dim, o_dim), jnp.float32, -bound2, bound2),
        "b2": jax.random.uniform(k4, (1, o_dim), jnp.float32, -bound2, bound2),
    }


if __name__ == "__main__":
    key = jax.random.PRNGKey(0)
    kf, kw, kp = jax.random.split(key, 3)

    B = 8
    f = jax.random.normal(kf, (B, F_DIM), jnp.float32)
    w = jax.random.normal(kw, (B, W_DIM), jnp.float32)
    params = init_params(kp)

    # Pure-JAX f32 reference of the same math.
    x = jnp.concatenate([f, w], axis=-1)
    h = jnp.maximum(x @ params["w1"] + params["b1"], 0.0)
    y_ref = jax.nn.sigmoid(h @ params["w2"] + params["b2"])

    # f32 storage path: bit-for-bit-ish against reference.
    y0_f32, y1_f32 = c660_mf_forward(f, w, params, io_dtype=jnp.float32)
    jax.block_until_ready((y0_f32, y1_f32))
    assert y0_f32.shape == (B, 1) and y1_f32.shape == (B, 1)
    assert jnp.allclose(y0_f32, y_ref[:, 0:1], atol=1e-5)
    assert jnp.allclose(y1_f32, y_ref[:, 1:2], atol=1e-5)

    # Default bf16 storage path (f32 accumulation): looser tolerance.
    y0, y1 = c660_mf_forward(f, w, params)
    jax.block_until_ready((y0, y1))
    assert y0.shape == (B, 1) and y1.shape == (B, 1)
    assert jnp.allclose(y0, y_ref[:, 0:1], atol=1e-2)
    assert jnp.allclose(y1, y_ref[:, 1:2], atol=1e-2)

    print("KERNEL_OK")
</pallas_src>

<mosaic_0001>
module attributes {stable_mosaic.version = 11 : i64} {
  func.func @_mlp_kernel(%arg0: i32, %arg1: memref<8x41xf32, #tpu.memory_space<vmem>>, %arg2: memref<8x41xf32, #tpu.memory_space<vmem>>, %arg3: memref<41x128xf32, #tpu.memory_space<vmem>>, %arg4: memref<41x128xf32, #tpu.memory_space<vmem>>, %arg5: memref<1x128xf32, #tpu.memory_space<vmem>>, %arg6: memref<128x2xf32, #tpu.memory_space<vmem>>, %arg7: memref<1x2xf32, #tpu.memory_space<vmem>>, %arg8: memref<8x2xf32, #tpu.memory_space<vmem>>) attributes {dimension_semantics = [#tpu.dimension_semantics<parallel>], iteration_bounds = array<i64: 1>, scalar_prefetch = 0 : i64, scratch_operands = 0 : i64, tpu.core_type = #tpu.core_type<tc>, window_params = [{transform_indices = @transform_0, window_bounds = array<i64: 8, 41>}, {transform_indices = @transform_1, window_bounds = array<i64: 8, 41>}, {pipeline_mode = #tpu.pipeline_mode<synchronous>, transform_indices = @transform_2, window_bounds = array<i64: 41, 128>}, {pipeline_mode = #tpu.pipeline_mode<synchronous>, transform_indices = @transform_3, window_bounds = array<i64: 41, 128>}, {pipeline_mode = #tpu.pipeline_mode<synchronous>, transform_indices = @transform_4, window_bounds = array<i64: 1, 128>}, {pipeline_mode = #tpu.pipeline_mode<synchronous>, transform_indices = @transform_5, window_bounds = array<i64: 128, 2>}, {pipeline_mode = #tpu.pipeline_mode<synchronous>, transform_indices = @transform_6, window_bounds = array<i64: 1, 2>}, {transform_indices = @transform_7, window_bounds = array<i64: 8, 2>}]} {
    %c0 = arith.constant 0 : index
    %c0_0 = arith.constant 0 : index
    %0 = vector.load %arg1[%c0, %c0_0] : memref<8x41xf32, #tpu.memory_space<vmem>>, vector<8x41xf32>
    %c0_1 = arith.constant 0 : index
    %c0_2 = arith.constant 0 : index
    %1 = vector.load %arg3[%c0_1, %c0_2] : memref<41x128xf32, #tpu.memory_space<vmem>>, vector<41x128xf32>
    %cst = arith.constant dense<0.000000e+00> : vector<8x128xf32>
    %2 = tpu.matmul %0, %1, %cst {dimension_numbers = #tpu.dot_dimension_numbers<[1], [0], [0], [1], [0, 0, 1, 1], [], []>} : vector<8x41xf32>, vector<41x128xf32>, vector<8x128xf32> -> vector<8x128xf32>
    %c0_3 = arith.constant 0 : index
    %c0_4 = arith.constant 0 : index
    %3 = vector.load %arg2[%c0_3, %c0_4] : memref<8x41xf32, #tpu.memory_space<vmem>>, vector<8x41xf32>
    %c0_5 = arith.constant 0 : index
    %c0_6 = arith.constant 0 : index
    %4 = vector.load %arg4[%c0_5, %c0_6] : memref<41x128xf32, #tpu.memory_space<vmem>>, vector<41x128xf32>
    %cst_7 = arith.constant dense<0.000000e+00> : vector<8x128xf32>
    %5 = tpu.matmul %3, %4, %cst_7 {dimension_numbers = #tpu.dot_dimension_numbers<[1], [0], [0], [1], [0, 0, 1, 1], [], []>} : vector<8x41xf32>, vector<41x128xf32>, vector<8x128xf32> -> vector<8x128xf32>
    %6 = arith.addf %2, %5 : vector<8x128xf32>
    %c0_8 = arith.constant 0 : index
    %c0_9 = arith.constant 0 : index
    %7 = vector.load %arg5[%c0_8, %c0_9] : memref<1x128xf32, #tpu.memory_space<vmem>>, vector<1x128xf32>
    %8 = vector.broadcast %7 : vector<1x128xf32> to vector<8x128xf32>
    %9 = arith.addf %6, %8 : vector<8x128xf32>
    %cst_10 = arith.constant 0.000000e+00 : f32
    %10 = vector.broadcast %cst_10 : f32 to vector<8x128xf32>
    %11 = arith.maximumf %9, %10 : vector<8x128xf32>
    %c0_11 = arith.constant 0 : index
    %c0_12 = arith.constant 0 : index
    %12 = vector.load %arg6[%c0_11, %c0_12] : memref<128x2xf32, #tpu.memory_space<vmem>>, vector<128x2xf32>
    %cst_13 = arith.constant dense<0.000000e+00> : vector<8x2xf32>
    %13 = tpu.matmul %11, %12, %cst_13 {dimension_numbers = #tpu.dot_dimension_numbers<[1], [0], [0], [1], [0, 0, 1, 1], [], []>} : vector<8x128xf32>, vector<128x2xf32>, vector<8x2xf32> -> vector<8x2xf32>
    %c0_14 = arith.constant 0 : index
    %c0_15 = arith.constant 0 : index
    %14 = vector.load %arg7[%c0_14, %c0_15] : memref<1x2xf32, #tpu.memory_space<vmem>>, vector<1x2xf32>
    %15 = vector.broadcast %14 : vector<1x2xf32> to vector<8x2xf32>
    %16 = arith.addf %13, %15 : vector<8x2xf32>
    %17 = arith.negf %16 : vector<8x2xf32>
    %18 = math.exp %17 : vector<8x2xf32>
    %cst_16 = arith.constant 1.000000e+00 : f32
    %19 = vector.broadcast %cst_16 : f32 to vector<8x2xf32>
    %20 = arith.addf %19, %18 : vector<8x2xf32>
    %21 = arith.divf %19, %20 : vector<8x2xf32>
    %c0_17 = arith.constant 0 : index
    %c0_18 = arith.constant 0 : index
    %22 = vector.load %arg8[%c0_17, %c0_18] : memref<8x2xf32, #tpu.memory_space<vmem>>, vector<8x2xf32>
    tpu.vector_store %arg8[%c0_17, %c0_18], %21 {strides = array<i32>} : memref<8x2xf32, #tpu.memory_space<vmem>>, vector<8x2xf32>,
    return
  }
  func.func @transform_0(%arg0: i32) -> (i32, i32) {
    %c0_i32 = arith.constant 0 : i32
    %c0_i32_0 = arith.constant 0 : i32
    return %arg0, %c0_i32 : i32, i32
  }
  func.func @transform_1(%arg0: i32) -> (i32, i32) {
    %c0_i32 = arith.constant 0 : i32
    %c0_i32_0 = arith.constant 0 : i32
    return %arg0, %c0_i32 : i32, i32
  }
  func.func @transform_2(%arg0: i32) -> (i32, i32) {
    %c0_i32 = arith.constant 0 : i32
    %c0_i32_0 = arith.constant 0 : i32
    %c0_i32_1 = arith.constant 0 : i32
    return %c0_i32, %c0_i32_0 : i32, i32
  }
  func.func @transform_3(%arg0: i32) -> (i32, i32) {
    %c0_i32 = arith.constant 0 : i32
    %c0_i32_0 = arith.constant 0 : i32
    %c0_i32_1 = arith.constant 0 : i32
    return %c0_i32, %c0_i32_0 : i32, i32
  }
  func.func @transform_4(%arg0: i32) -> (i32, i32) {
    %c0_i32 = arith.constant 0 : i32
    %c0_i32_0 = arith.constant 0 : i32
    %c0_i32_1 = arith.constant 0 : i32
    return %c0_i32, %c0_i32_0 : i32, i32
  }
  func.func @transform_5(%arg0: i32) -> (i32, i32) {
    %c0_i32 = arith.constant 0 : i32
    %c0_i32_0 = arith.constant 0 : i32
    %c0_i32_1 = arith.constant 0 : i32
    return %c0_i32, %c0_i32_0 : i32, i32
  }
  func.func @transform_6(%arg0: i32) -> (i32, i32) {
    %c0_i32 = arith.constant 0 : i32
    %c0_i32_0 = arith.constant 0 : i32
    %c0_i32_1 = arith.constant 0 : i32
    return %c0_i32, %c0_i32_0 : i32, i32
  }
  func.func @transform_7(%arg0: i32) -> (i32, i32) {
    %c0_i32 = arith.constant 0 : i32
    %c0_i32_0 = arith.constant 0 : i32
    return %arg0, %c0_i32 : i32, i32
  }
}

</mosaic_0001>

<llo_original>
// kernel: c660_mf_forward.1
$region0: #{c660_mf_forward.1}
  #allocation0 [shape = 'u32[]', space=smem, size = 0x4, offset = 0x4, fixed_abs, tag = 'smem constant byte address 0x4 - core index']
  #allocation1 [shape = 'u32[144,128]{1,0:T(1,128)}', space=vmem, size = 0x12000, scoped, tag = 'internal scratch']
  %s0 = inlined_call_operand.vmem [shape: f32[8,41], index: 0, kind: input, shape index: {}]
  %s1 = inlined_call_operand.vmem [shape: f32[8,41], index: 1, kind: input, shape index: {}]
  %s2 = inlined_call_operand.vmem [shape: f32[41,128], index: 2, kind: input, shape index: {}]
  %s3 = inlined_call_operand.vmem [shape: f32[41,128], index: 3, kind: input, shape index: {}]
  %s4 = inlined_call_operand.vmem [shape: f32[1,128], index: 4, kind: input, shape index: {}]
  %s5 = inlined_call_operand.vmem [shape: f32[128,2], index: 5, kind: input, shape index: {}]
  %s6 = inlined_call_operand.vmem [shape: f32[1,2], index: 6, kind: input, shape index: {}]
  %s7 = inlined_call_operand.vmem [shape: f32[8,2], index: 7, kind: output, shape index: {}]
  %s8 = sld [smem:[#allocation0]]
  $region38: #{c660_mf_forward.1} parent=0
    _
  %s10 = ssub.s32 1, %s8
  %s11 = scalar_select 0, %s10, %s8
  // Predicated region
  $region2: #{c660_mf_forward.1} parent=0 // pred_check
    _
  $region3: #{c660_mf_forward.1} parent=0 // pred_check_branch
    %13 = sbr.rel (0) target = $region5
  $region4: #{c660_mf_forward.1} parent=0 // pred_region
    _
  $region5: #{c660_mf_forward.1} parent=0 // pred_fallthru
    _
  // Predicated region
  $region6: #{c660_mf_forward.1} parent=0 // pred_check
    _
  $region7: #{c660_mf_forward.1} parent=0 // pred_check_branch
    %15 = sbr.rel (0) target = $region9
  $region8: #{c660_mf_forward.1} parent=0 // pred_region
    _
  $region9: #{c660_mf_forward.1} parent=0 // pred_fallthru
    _
  // Predicated region
  $region10: #{c660_mf_forward.1} parent=0 // pred_check
    _
  $region11: #{c660_mf_forward.1} parent=0 // pred_check_branch
    %17 = sbr.rel (0) target = $region13
  $region12: #{c660_mf_forward.1} parent=0 // pred_region
    _
  $region13: #{c660_mf_forward.1} parent=0 // pred_fallthru
    _
  // Predicated region
  $region14: #{c660_mf_forward.1} parent=0 // pred_check
    _
  $region15: #{c660_mf_forward.1} parent=0 // pred_check_branch
    %19 = sbr.rel (0) target = $region17
  $region16: #{c660_mf_forward.1} parent=0 // pred_region
    _
  $region17: #{c660_mf_forward.1} parent=0 // pred_fallthru
    _
  // Predicated region
  $region18: #{c660_mf_forward.1} parent=0 // pred_check
    _
  $region19: #{c660_mf_forward.1} parent=0 // pred_check_branch
    %21 = sbr.rel (0) target = $region21
  $region20: #{c660_mf_forward.1} parent=0 // pred_region
    _
  $region21: #{c660_mf_forward.1} parent=0 // pred_fallthru
    _
  // Predicated region
  $region22: #{c660_mf_forward.1} parent=0 // pred_check
    _
  $region23: #{c660_mf_forward.1} parent=0 // pred_check_branch
    %23 = sbr.rel (0) target = $region25
  $region24: #{c660_mf_forward.1} parent=0 // pred_region
    _
  $region25: #{c660_mf_forward.1} parent=0 // pred_fallthru
    _
  // Predicated region
  $region26: #{c660_mf_forward.1} parent=0 // pred_check
    _
  $region27: #{c660_mf_forward.1} parent=0 // pred_check_branch
    %25 = sbr.rel (0) target = $region29
  $region28: #{c660_mf_forward.1} parent=0 // pred_region
    _
  $region29: #{c660_mf_forward.1} parent=0 // pred_fallthru
    _
  %v26 = vld [vmem:[%s0] sm:$0xff]
  %v27 = vld [vmem:[%s2] sm:$0xff]
  %v28 = vld [vmem:[%s2 + $0x8] sm:$0xff]
  %v29 = vld [vmem:[%s2 + $0x10] sm:$0xff]
  %v30 = vld [vmem:[%s2 + $0x18] sm:$0xff]
  %v31 = vld [vmem:[%s2 + $0x20] sm:$0xff]
  %v32 = vld [vmem:[%s2 + $0x28] sm:$0x1]
  %v33 = vld [vmem:[%s1] sm:$0xff]
  %v34 = vld [vmem:[%s3] sm:$0xff]
  %v35 = vld [vmem:[%s3 + $0x8] sm:$0xff]
  %v36 = vld [vmem:[%s3 + $0x10] sm:$0xff]
  %v37 = vld [vmem:[%s3 + $0x18] sm:$0xff]
  %v38 = vld [vmem:[%s3 + $0x20] sm:$0xff]
  %v39 = vld [vmem:[%s3 + $0x28] sm:$0x1]
  %vm40 = vcmask 334848
  %v42 = vsel %vm40, %v33, 0
  %vm44 = vcmask 1040384
  %v46 = vsel %vm44, %v39, 0
  %48 = vmatprep.subr.mxu0 0.0
  %49 = vmatpush1.msra.mxu0 0.0
  %50 = vmatprep.subr.mxu0 0.0
  %51 = vmatpush1.msra.mxu0 0.0
  %52 = vmatprep.subr.mxu0 0.0
  %53 = vmatpush1.msra.mxu0 0.0
  %54 = vmatprep.subr.mxu0 0.0
  %55 = vmatpush1.msra.mxu0 0.0
  %56 = vmatprep.subr.mxu0 0.0
  %57 = vmatpush1.msra.mxu0 0.0
  %58 = vmatprep.subr.mxu0 0.0
  %59 = vmatpush1.msra.mxu0 0.0
  %60 = vmatprep.subr.mxu0 0.0
  %61 = vmatpush1.msra.mxu0 0.0
  %62 = vmatprep.subr.mxu0 0.0
  %63 = vmatpush1.msra.mxu0 0.0
  %64 = vmatprep.subr.mxu0 0.0
  %65 = vmatpush1.msra.mxu0 0.0
  %66 = vmatprep.subr.mxu0 0.0
  %67 = vmatpush1.msra.mxu0 0.0
  %68 = vmatprep.subr.mxu0 0.0
  %69 = vmatpush1.msra.mxu0 %v46
  %70 = vmatprep.subr.mxu0 0.0
  %71 = vmatpush1.msra.mxu0 %v38
  %72 = vmatprep.subr.mxu0 0.0
  %73 = vmatpush1.msra.mxu0 %v37
  %74 = vmatprep.subr.mxu0 0.0
  %75 = vmatpush1.msra.mxu0 %v36
  %76 = vmatprep.subr.mxu0 0.0
  %77 = vmatpush1.msra.mxu0 %v35
  %78 = vmatprep.subr.mxu0 0.0
  %79 = vmatpush1.msra.mxu0 %v34
  %80 = vmatprep.subr.mxu0 0.0
  %81 = vmatpush2.msra.mxu0 0.0
  %82 = vmatprep.subr.mxu0 0.0
  %83 = vmatpush2.msra.mxu0 0.0
  %84 = vmatprep.subr.mxu0 0.0
  %85 = vmatpush2.msra.mxu0 0.0
  %86 = vmatprep.subr.mxu0 0.0
  %87 = vmatpush2.msra.mxu0 0.0
  %88 = vmatprep.subr.mxu0 0.0
  %89 = vmatpush2.msra.mxu0 0.0
  %90 = vmatprep.subr.mxu0 0.0
  %91 = vmatpush2.msra.mxu0 0.0
  %92 = vmatprep.subr.mxu0 0.0
  %93 = vmatpush2.msra.mxu0 0.0
  %94 = vmatprep.subr.mxu0 0.0
  %95 = vmatpush2.msra.mxu0 0.0
  %96 = vmatprep.subr.mxu0 0.0
  %97 = vmatpush2.msra.mxu0 0.0
  %98 = vmatprep.subr.mxu0 0.0
  %99 = vmatpush2.msra.mxu0 0.0
  %100 = vmatprep.subr.mxu0 0.0
  %101 = vmatpush2.msra.mxu0 0.0
  %102 = vmatprep.subr.mxu0 0.0
  %103 = vmatpush2.msra.mxu0 0.0
  %104 = vmatprep.subr.mxu0 0.0
  %105 = vmatpush2.msra.mxu0 0.0
  %106 = vmatprep.subr.mxu0 0.0
  %107 = vmatpush2.msra.mxu0 0.0
  %108 = vmatprep.subr.mxu0 0.0
  %109 = vmatpush2.msra.mxu0 0.0
  %110 = vmatprep.subr.mxu0 0.0
  %111 = vmatpush2.msra.mxu0 0.0
  %112 = vmatprep.mubr.f32.mxu0 0.0
  %113 = vmatmul.mubr.f32.gmra.mxu0 %v42
  %v114 = vpop.f32.mrf.mxu0
  %v115 = vadd.f32 0.0, %v114
  %v116 = vpop.f32.mrf.mxu0
  %117 = vdwg.mxu0
  %v119 = vsel %vm40, %v26, 0
  %v122 = vsel %vm44, %v32, 0
  %124 = vmatprep.subr.mxu0 0.0
  %125 = vmatpush1.msra.mxu0 0.0
  %126 = vmatprep.subr.mxu0 0.0
  %127 = vmatpush1.msra.mxu0 0.0
  %128 = vmatprep.subr.mxu0 0.0
  %129 = vmatpush1.msra.mxu0 0.0
  %130 = vmatprep.subr.mxu0 0.0
  %131 = vmatpush1.msra.mxu0 0.0
  %132 = vmatprep.subr.mxu0 0.0
  %133 = vmatpush1.msra.mxu0 0.0
  %134 = vmatprep.subr.mxu0 0.0
  %135 = vmatpush1.msra.mxu0 0.0
  %136 = vmatprep.subr.mxu0 0.0
  %137 = vmatpush1.msra.mxu0 0.0
  %138 = vmatprep.subr.mxu0 0.0
  %139 = vmatpush1.msra.mxu0 0.0
  %140 = vmatprep.subr.mxu0 0.0
  %141 = vmatpush1.msra.mxu0 0.0
  %142 = vmatprep.subr.mxu0 0.0
  %143 = vmatpush1.msra.mxu0 0.0
  %144 = vmatprep.subr.mxu0 0.0
  %145 = vmatpush1.msra.mxu0 %v122
  %146 = vmatprep.subr.mxu0 0.0
  %147 = vmatpush1.msra.mxu0 %v31
  %148 = vmatprep.subr.mxu0 0.0
  %149 = vmatpush1.msra.mxu0 %v30
  %150 = vmatprep.subr.mxu0 0.0
  %151 = vmatpush1.msra.mxu0 %v29
  %152 = vmatprep.subr.mxu0 0.0
  %153 = vmatpush1.msra.mxu0 %v28
  %154 = vmatprep.subr.mxu0 0.0
  %155 = vmatpush1.msra.mxu0 %v27
  %156 = vmatprep.subr.mxu0 0.0
  %157 = vmatpush2.msra.mxu0 0.0
  %158 = vmatprep.subr.mxu0 0.0
  %159 = vmatpush2.msra.mxu0 0.0
  %160 = vmatprep.subr.mxu0 0.0
  %161 = vmatpush2.msra.mxu0 0.0
  %162 = vmatprep.subr.mxu0 0.0
  %163 = vmatpush2.msra.mxu0 0.0
  %164 = vmatprep.subr.mxu0 0.0
  %165 = vmatpush2.msra.mxu0 0.0
  %166 = vmatprep.subr.mxu0 0.0
  %167 = vmatpush2.msra.mxu0 0.0
  %168 = vmatprep.subr.mxu0 0.0
  %169 = vmatpush2.msra.mxu0 0.0
  %170 = vmatprep.subr.mxu0 0.0
  %171 = vmatpush2.msra.mxu0 0.0
  %172 = vmatprep.subr.mxu0 0.0
  %173 = vmatpush2.msra.mxu0 0.0
  %174 = vmatprep.subr.mxu0 0.0
  %175 = vmatpush2.msra.mxu0 0.0
  %176 = vmatprep.subr.mxu0 0.0
  %177 = vmatpush2.msra.mxu0 0.0
  %178 = vmatprep.subr.mxu0 0.0
  %179 = vmatpush2.msra.mxu0 0.0
  %180 = vmatprep.subr.mxu0 0.0
  %181 = vmatpush2.msra.mxu0 0.0
  %182 = vmatprep.subr.mxu0 0.0
  %183 = vmatpush2.msra.mxu0 0.0
  %184 = vmatprep.subr.mxu0 0.0
  %185 = vmatpush2.msra.mxu0 0.0
  %186 = vmatprep.subr.mxu0 0.0
  %187 = vmatpush2.msra.mxu0 0.0
  %188 = vmatprep.mubr.f32.mxu0 0.0
  %189 = vmatmul.mubr.f32.gmra.mxu0 %v119
  %v190 = vpop.f32.mrf.mxu0
  %v191 = vadd.f32 %v115, %v190
  %v192 = vpop.f32.mrf.mxu0
  %193 = vdwg.mxu0
  %v194 = vld [vmem:[%s4] sm:$0x1]
  %v196 = vlaneseq
  %v197 = vshrl.u32 %v196, 7
  %v198 = vsub.s32 0, %v197
  %v199 = vrot.slane %v194, %v198
  %v201 = vadd.f32 %v191, %v199
  %v202 = vmax.f32 %v201, 0.0
  %v203 = vld [vmem:[%s5] sm:$0xff]
  %v204 = vld [vmem:[%s5 + $0x8] sm:$0xff]
  %v205 = vld [vmem:[%s5 + $0x10] sm:$0xff]
  %v206 = vld [vmem:[%s5 + $0x18] sm:$0xff]
  %v207 = vld [vmem:[%s5 + $0x20] sm:$0xff]
  %v208 = vld [vmem:[%s5 + $0x28] sm:$0xff]
  %v209 = vld [vmem:[%s5 + $0x30] sm:$0xff]
  %v210 = vld [vmem:[%s5 + $0x38] sm:$0xff]
  %v211 = vld [vmem:[%s5 + $0x40] sm:$0xff]
  %v212 = vld [vmem:[%s5 + $0x48] sm:$0xff]
  %v213 = vld [vmem:[%s5 + $0x50] sm:$0xff]
  %v214 = vld [vmem:[%s5 + $0x58] sm:$0xff]
  %v215 = vld [vmem:[%s5 + $0x60] sm:$0xff]
  %v216 = vld [vmem:[%s5 + $0x68] sm:$0xff]
  %v217 = vld [vmem:[%s5 + $0x70] sm:$0xff]
  %v218 = vld [vmem:[%s5 + $0x78] sm:$0xff]
  %v219 = vld [vmem:[%s6] sm:$0x1]
  %v221 = vlaneseq
  %v222 = vshrl.u32 %v221, 7
  %v223 = vsub.s32 0, %v222
  %v224 = vrot.slane %v219, %v223
  %226 = vmatprep.subr.mxu0 0.0
  %227 = vmatpush1.msra.mxu0 %v218
  %228 = vmatprep.subr.mxu0 0.0
  %229 = vmatpush1.msra.mxu0 %v217
  %230 = vmatprep.subr.mxu0 0.0
  %231 = vmatpush1.msra.mxu0 %v216
  %232 = vmatprep.subr.mxu0 0.0
  %233 = vmatpush1.msra.mxu0 %v215
  %234 = vmatprep.subr.mxu0 0.0
  %235 = vmatpush1.msra.mxu0 %v214
  %236 = vmatprep.subr.mxu0 0.0
  %237 = vmatpush1.msra.mxu0 %v213
  %238 = vmatprep.subr.mxu0 0.0
  %239 = vmatpush1.msra.mxu0 %v212
  %240 = vmatprep.subr.mxu0 0.0
  %241 = vmatpush1.msra.mxu0 %v211
  %242 = vmatprep.subr.mxu0 0.0
  %243 = vmatpush1.msra.mxu0 %v210
  %244 = vmatprep.subr.mxu0 0.0
  %245 = vmatpush1.msra.mxu0 %v209
  %246 = vmatprep.subr.mxu0 0.0
  %247 = vmatpush1.msra.mxu0 %v208
  %248 = vmatprep.subr.mxu0 0.0
  %249 = vmatpush1.msra.mxu0 %v207
  %250 = vmatprep.subr.mxu0 0.0
  %251 = vmatpush1.msra.mxu0 %v206
  %252 = vmatprep.subr.mxu0 0.0
  %253 = vmatpush1.msra.mxu0 %v205
  %254 = vmatprep.subr.mxu0 0.0
  %255 = vmatpush1.msra.mxu0 %v204
  %256 = vmatprep.subr.mxu0 0.0
  %257 = vmatpush1.msra.mxu0 %v203
  %258 = vmatprep.subr.mxu0 0.0
  %259 = vmatpush2.msra.mxu0 0.0
  %260 = vmatprep.subr.mxu0 0.0
  %261 = vmatpush2.msra.mxu0 0.0
  %262 = vmatprep.subr.mxu0 0.0
  %263 = vmatpush2.msra.mxu0 0.0
  %264 = vmatprep.subr.mxu0 0.0
  %265 = vmatpush2.msra.mxu0 0.0
  %266 = vmatprep.subr.mxu0 0.0
  %267 = vmatpush2.msra.mxu0 0.0
  %268 = vmatprep.subr.mxu0 0.0
  %269 = vmatpush2.msra.mxu0 0.0
  %270 = vmatprep.subr.mxu0 0.0
  %271 = vmatpush2.msra.mxu0 0.0
  %272 = vmatprep.subr.mxu0 0.0
  %273 = vmatpush2.msra.mxu0 0.0
  %274 = vmatprep.subr.mxu0 0.0
  %275 = vmatpush2.msra.mxu0 0.0
  %276 = vmatprep.subr.mxu0 0.0
  %277 = vmatpush2.msra.mxu0 0.0
  %278 = vmatprep.subr.mxu0 0.0
  %279 = vmatpush2.msra.mxu0 0.0
  %280 = vmatprep.subr.mxu0 0.0
  %281 = vmatpush2.msra.mxu0 0.0
  %282 = vmatprep.subr.mxu0 0.0
  %283 = vmatpush2.msra.mxu0 0.0
  %284 = vmatprep.subr.mxu0 0.0
  %285 = vmatpush2.msra.mxu0 0.0
  %286 = vmatprep.subr.mxu0 0.0
  %287 = vmatpush2.msra.mxu0 0.0
  %288 = vmatprep.subr.mxu0 0.0
  %289 = vmatpush2.msra.mxu0 0.0
  %290 = vmatprep.mubr.f32.mxu0 0.0
  %291 = vmatmul.mubr.f32.gmra.mxu0 %v202
  %v292 = vpop.f32.mrf.mxu0
  %v293 = vadd.f32 %v224, %v292
  %v294 = vpop.f32.mrf.mxu0
  %295 = vdwg.mxu0
  %v296 = vxor.u32 %v293, 2147483648
  %v297 = vmul.f32 %v296, 1.442695
  %v298 = vpow.pop %v297
  %v299 = vadd.f32 %v298, 1.0
  %v300 = vrcp.pop %v299
  %v301 = vmul.f32 1.0, %v300
  %vm302 = vcmask 15360
  %303 = vst.msk [vmem:[%s7] sm:$0xff] %vm302, %v301
  // Predicated region
  $region30: #{c660_mf_forward.1} parent=0 // pred_check
    _
  $region31: #{c660_mf_forward.1} parent=0 // pred_check_branch
    %305 = sbr.rel (0) target = $region33
  $region32: #{c660_mf_forward.1} parent=0 // pred_region
    _
  $region33: #{c660_mf_forward.1} parent=0 // pred_fallthru
    _
  // Predicated region
  $region34: #{c660_mf_forward.1} parent=0 // pred_check
    _
  $region35: #{c660_mf_forward.1} parent=0 // pred_check_branch
    %307 = sbr.rel (0) target = $region37
  $region36: #{c660_mf_forward.1} parent=0 // pred_region
    _
  $region37: #{c660_mf_forward.1} parent=0 // pred_fallthru
    _

</llo_original>
